<compile_context>
chip_gen: v7x
topology: tpu7x:2x2x1
jax: 0.10.0
libtpu: 0.0.40
codegen_flags: <defaults>
</compile_context>

<pallas_src>
import jax
import jax.numpy as jnp
from jax.experimental import pallas as pl
from jax.experimental.pallas import tpu as pltpu


# ----------------------------------------------------------------------------
# Kernels
# ----------------------------------------------------------------------------

def _ffn_resident_kernel(x_ref, w1_ref, b1_ref, w2_ref, b2_ref, o_ref):
    # x_ref: [TM, H]  w1_ref: [H, I]  b1_ref: [1, I]  w2_ref: [I, H]
    # b2_ref: [1, H]  o_ref: [TM, H]
    x = x_ref[...].astype(w1_ref.dtype)
    h = jnp.dot(x, w1_ref[...], preferred_element_type=jnp.float32)
    h = jnp.maximum(h + b1_ref[...].astype(jnp.float32), 0.0)    # bias + ReLU (VPU, f32)
    h = h.astype(w2_ref.dtype)                                   # MXU operand dtype
    out = jnp.dot(h, w2_ref[...], preferred_element_type=jnp.float32)
    o_ref[...] = (out + b2_ref[...].astype(jnp.float32)).astype(o_ref.dtype)


def _ffn_stream_kernel(x_ref, w1_ref, b1_ref, w2_ref, b2_ref, o_ref, acc_ref):
    # Fallback: intermediate dim split over grid axis 1 (reduction).
    k = pl.program_id(1)

    @pl.when(k == 0)
    def _init():
        acc_ref[...] = jnp.zeros_like(acc_ref)

    x = x_ref[...].astype(w1_ref.dtype)
    h = jnp.dot(x, w1_ref[...], preferred_element_type=jnp.float32)
    h = jnp.maximum(h + b1_ref[...].astype(jnp.float32), 0.0)
    h = h.astype(w2_ref.dtype)
    acc_ref[...] += jnp.dot(h, w2_ref[...], preferred_element_type=jnp.float32)

    @pl.when(k == pl.num_programs(1) - 1)
    def _finalize():
        o_ref[...] = (acc_ref[...] + b2_ref[...].astype(jnp.float32)).astype(o_ref.dtype)


# ----------------------------------------------------------------------------
# Tiling / budget helpers
# ----------------------------------------------------------------------------

def _round_up(x, m):
    return ((x + m - 1) // m) * m


def _vmem_budget_bytes():
    """~80% of physical per-core VMEM (headroom for Mosaic internal scratch)."""
    try:
        cap = int(pltpu.get_tpu_info().vmem_capacity_bytes)
    except Exception:
        cap = 64 * 1024 * 1024  # conservative fallback (v7x per-core VMEM)
    return int(cap * 0.8)


def _resident_vmem_bytes(tm, hidden, inter, x_dt, w_dt, out_dt):
    dbl = 2  # default double-buffering on every BlockSpec (conservative for weights)
    weights = (hidden * inter + inter * hidden + inter + hidden) * w_dt.itemsize * dbl
    x_io = tm * hidden * (x_dt.itemsize + out_dt.itemsize) * dbl
    interm = tm * inter * (4 + w_dt.itemsize)       # f32 intermediate + cast copy
    return weights + x_io + interm


def _stream_vmem_bytes(tm, ti, hidden, x_dt, w_dt, out_dt):
    dbl = 2
    weights = (hidden * ti + ti * hidden + ti + hidden) * w_dt.itemsize * dbl
    x_io = tm * hidden * (x_dt.itemsize + out_dt.itemsize) * dbl
    acc = tm * hidden * 4
    interm = tm * ti * (4 + w_dt.itemsize)
    return weights + x_io + acc + interm


def _pick_tm(m, target, align):
    """Row tile: multiple of `align` (MXU edge) when tiling, else whole (padded) M."""
    if m <= target:
        return _round_up(m, 8)
    return max(align, (target // align) * align)


def _pick_divisor_tile(dim, target, align):
    """Largest tile <= target that is a multiple of `align` and divides `dim`."""
    if dim <= target:
        return dim
    t = (min(target, dim) // align) * align
    while t >= align:
        if dim % t == 0:
            return t
        t -= align
    return dim


# ----------------------------------------------------------------------------
# Wrapper
# ----------------------------------------------------------------------------

def feed_forward(x, w1, b1, w2, b2, *, tm=512, ti=512, tm_align=128,
                 residency="auto", vmem_limit_bytes=None):
    """dropout(dense2(relu(dense1(x)))), inference mode (dropout = identity).

    x:  [batch, seq, hidden]
    w1: [hidden, intermediate]  (transpose of PyTorch nn.Linear.weight)
    b1: [intermediate]   w2: [intermediate, hidden]   b2: [hidden]

    tm: row-tile target (multiple of 128).  With resident weights tm only needs
        to amortize per-step overhead; 256-512 is plenty on all generations.
        If weights do not fit VMEM (streaming path), raise tm past the
        compute/bandwidth crossover (~240 / ~670 / ~310 FLOP per weight byte on
        v5e / v6e / v7x in bf16).
    residency: "auto" | "resident" | "stream".
    """
    batch, seq, hidden = x.shape
    inter = w1.shape[1]
    m = batch * seq

    budget = vmem_limit_bytes if vmem_limit_bytes is not None else _vmem_budget_bytes()
    x_dt, w_dt, out_dt = x.dtype, w1.dtype, x.dtype

    tm_eff = _pick_tm(m, tm, tm_align)

    # ---- choose path --------------------------------------------------------
    if residency == "resident":
        use_resident = True
    elif residency == "stream":
        use_resident = False
    else:  # auto
        use_resident = _resident_vmem_bytes(tm_eff, hidden, inter, x_dt, w_dt, out_dt) <= budget
        if not use_resident and tm_eff > tm_align:
            t = (tm_eff // tm_align) * tm_align
            while t >= tm_align and _resident_vmem_bytes(t, hidden, inter, x_dt, w_dt, out_dt) > budget:
                t -= tm_align
            if t >= tm_align:
                tm_eff, use_resident = t, True

    ti_eff = inter
    if not use_resident:
        ti_eff = _pick_divisor_tile(inter, ti, 128)
        while (_stream_vmem_bytes(tm_eff, ti_eff, hidden, x_dt, w_dt, out_dt) > budget
               and tm_eff > tm_align):
            tm_eff -= tm_align

    # ---- pad M so every row tile is dense (unmasked stores, full MXU tiles) --
    m_pad = _round_up(m, tm_eff)
    x2d = x.reshape(m, hidden)
    if m_pad != m:
        x2d = jnp.pad(x2d, ((0, m_pad - m), (0, 0)))
    b1r = b1.reshape(1, inter)
    b2r = b2.reshape(1, hidden)

    # ---- advisory cost estimate reflecting the actual DMA pattern ------------
    flops = 4 * m_pad * hidden * inter
    io_bytes = m_pad * hidden * (x_dt.itemsize + out_dt.itemsize)
    w_bytes = (w1.size + b1.size + w2.size + b2.size) * w_dt.itemsize
    if use_resident:
        bytes_accessed = io_bytes + w_bytes                      # weights move once
    else:
        n_row_tiles = m_pad // tm_eff
        bytes_accessed = io_bytes + n_row_tiles * (w1.size + b1.size + w2.size) * w_dt.itemsize \
            + b2.size * w_dt.itemsize                            # weights re-streamed per row tile

    if use_resident:
        grid = (m_pad // tm_eff,)
        in_specs = [
            pl.BlockSpec((tm_eff, hidden), lambda i: (i, 0)),    # x: streamed over M
            pl.BlockSpec((hidden, inter), lambda i: (0, 0)),     # w1: resident
            pl.BlockSpec((1, inter), lambda i: (0, 0)),          # b1: resident
            pl.BlockSpec((inter, hidden), lambda i: (0, 0)),     # w2: resident
            pl.BlockSpec((1, hidden), lambda i: (0, 0)),         # b2: resident
        ]
        out_spec = pl.BlockSpec((tm_eff, hidden), lambda i: (i, 0))
        scratch = []
        kernel = _ffn_resident_kernel
        dims = ("parallel",)
    else:
        grid = (m_pad // tm_eff, inter // ti_eff)
        in_specs = [
            pl.BlockSpec((tm_eff, hidden), lambda i, k: (i, 0)),
            pl.BlockSpec((hidden, ti_eff), lambda i, k: (0, k)),
            pl.BlockSpec((1, ti_eff), lambda i, k: (0, k)),
            pl.BlockSpec((ti_eff, hidden), lambda i, k: (k, 0)),
            pl.BlockSpec((1, hidden), lambda i, k: (0, 0)),
        ]
        out_spec = pl.BlockSpec((tm_eff, hidden), lambda i, k: (i, 0))
        scratch = [pltpu.VMEM((tm_eff, hidden), jnp.float32)]
        kernel = _ffn_stream_kernel
        dims = ("parallel", "arbitrary")

    out2d = pl.pallas_call(
        kernel,
        out_shape=jax.ShapeDtypeStruct((m_pad, hidden), out_dt),
        grid=grid,
        in_specs=in_specs,
        out_specs=out_spec,
        scratch_shapes=scratch,
        compiler_params=pltpu.CompilerParams(
            dimension_semantics=dims,
            vmem_limit_bytes=budget,
        ),
        cost_estimate=pl.CostEstimate(
            flops=flops, transcendentals=0, bytes_accessed=bytes_accessed),
    )(x2d, w1, b1r, w2, b2r)

    if m_pad != m:
        out2d = out2d[:m]
    return out2d.reshape(batch, seq, hidden)


# ----------------------------------------------------------------------------
# Param init / reference
# ----------------------------------------------------------------------------

def init_params(key, hidden_size, intermediate_size, dtype=jnp.float32):
    """Deterministic init mimicking nn.Linear's U(-1/sqrt(fan_in), 1/sqrt(fan_in))."""
    k1, k2, k3, k4 = jax.random.split(key, 4)
    bound1 = 1.0 / jnp.sqrt(hidden_size)
    bound2 = 1.0 / jnp.sqrt(intermediate_size)
    # stored as [in_features, out_features] (transpose of PyTorch's weight layout)
    w1 = jax.random.uniform(k1, (hidden_size, intermediate_size), dtype,
                            minval=-bound1, maxval=bound1)
    b1 = jax.random.uniform(k2, (intermediate_size,), dtype,
                            minval=-bound1, maxval=bound1)
    w2 = jax.random.uniform(k3, (intermediate_size, hidden_size), dtype,
                            minval=-bound2, maxval=bound2)
    b2 = jax.random.uniform(k4, (hidden_size,), dtype,
                            minval=-bound2, maxval=bound2)
    return w1, b1, w2, b2


def _reference(x, w1, b1, w2, b2):
    return jnp.maximum(x @ w1 + b1, 0.0) @ w2 + b2


if __name__ == "__main__":
    # --- Case 1: small shapes matching the module (resident path, single tile) ---
    batch, seq, hidden, inter = 2, 8, 32, 64
    key = jax.random.PRNGKey(0)
    kx, kp = jax.random.split(key)
    x = jax.random.normal(kx, (batch, seq, hidden), jnp.float32)
    w1, b1, w2, b2 = init_params(kp, hidden, inter)

    out = jax.block_until_ready(feed_forward(x, w1, b1, w2, b2))
    ref = _reference(x, w1, b1, w2, b2)
    assert out.shape == (batch, seq, hidden)
    assert jnp.allclose(out, ref, atol=1e-5, rtol=1e-5)

    # --- Case 2: resident path, multiple row tiles + M padding (m=192 -> 256) ---
    batch2, seq2, hidden2, inter2 = 2, 96, 128, 512
    kx2, kp2 = jax.random.split(jax.random.PRNGKey(1))
    x2 = jax.random.normal(kx2, (batch2, seq2, hidden2), jnp.float32)
    p2 = init_params(kp2, hidden2, inter2)
    out2 = jax.block_until_ready(feed_forward(x2, *p2, tm=128))   # grid = (2,)
    ref2 = _reference(x2, *p2)
    assert out2.shape == (batch2, seq2, hidden2)
    # looser tolerance: matmul precision of the plain-JAX reference may differ slightly
    assert jnp.allclose(out2, ref2, atol=2e-2, rtol=2e-2)

    # --- Case 3: forced streaming fallback (reduction over intermediate dim) ----
    out3 = jax.block_until_ready(
        feed_forward(x2, *p2, tm=128, ti=128, residency="stream"))  # grid = (2, 4)
    assert jnp.allclose(out3, ref2, atol=2e-2, rtol=2e-2)

    print("KERNEL_OK")
</pallas_src>

<mosaic_0001>
module attributes {stable_mosaic.version = 11 : i64} {
  func.func @_ffn_resident_kernel(%arg0: i32, %arg1: memref<16x32xf32, #tpu.memory_space<vmem>>, %arg2: memref<32x64xf32, #tpu.memory_space<vmem>>, %arg3: memref<1x64xf32, #tpu.memory_space<vmem>>, %arg4: memref<64x32xf32, #tpu.memory_space<vmem>>, %arg5: memref<1x32xf32, #tpu.memory_space<vmem>>, %arg6: memref<16x32xf32, #tpu.memory_space<vmem>>) attributes {dimension_semantics = [#tpu.dimension_semantics<parallel>], iteration_bounds = array<i64: 1>, scalar_prefetch = 0 : i64, scratch_operands = 0 : i64, tpu.core_type = #tpu.core_type<tc>, window_params = [{transform_indices = @transform_0, window_bounds = array<i64: 16, 32>}, {pipeline_mode = #tpu.pipeline_mode<synchronous>, transform_indices = @transform_1, window_bounds = array<i64: 32, 64>}, {pipeline_mode = #tpu.pipeline_mode<synchronous>, transform_indices = @transform_2, window_bounds = array<i64: 1, 64>}, {pipeline_mode = #tpu.pipeline_mode<synchronous>, transform_indices = @transform_3, window_bounds = array<i64: 64, 32>}, {pipeline_mode = #tpu.pipeline_mode<synchronous>, transform_indices = @transform_4, window_bounds = array<i64: 1, 32>}, {transform_indices = @transform_5, window_bounds = array<i64: 16, 32>}]} {
    %c0 = arith.constant 0 : index
    %c0_0 = arith.constant 0 : index
    %0 = vector.load %arg1[%c0, %c0_0] : memref<16x32xf32, #tpu.memory_space<vmem>>, vector<16x32xf32>
    %c0_1 = arith.constant 0 : index
    %c0_2 = arith.constant 0 : index
    %1 = vector.load %arg2[%c0_1, %c0_2] : memref<32x64xf32, #tpu.memory_space<vmem>>, vector<32x64xf32>
    %cst = arith.constant dense<0.000000e+00> : vector<16x64xf32>
    %2 = tpu.matmul %0, %1, %cst {dimension_numbers = #tpu.dot_dimension_numbers<[1], [0], [0], [1], [0, 0, 1, 1], [], []>} : vector<16x32xf32>, vector<32x64xf32>, vector<16x64xf32> -> vector<16x64xf32>
    %c0_3 = arith.constant 0 : index
    %c0_4 = arith.constant 0 : index
    %3 = vector.load %arg3[%c0_3, %c0_4] : memref<1x64xf32, #tpu.memory_space<vmem>>, vector<1x64xf32>
    %4 = vector.broadcast %3 : vector<1x64xf32> to vector<16x64xf32>
    %5 = arith.addf %2, %4 : vector<16x64xf32>
    %cst_5 = arith.constant 0.000000e+00 : f32
    %6 = vector.broadcast %cst_5 : f32 to vector<16x64xf32>
    %7 = arith.maximumf %5, %6 : vector<16x64xf32>
    %c0_6 = arith.constant 0 : index
    %c0_7 = arith.constant 0 : index
    %8 = vector.load %arg4[%c0_6, %c0_7] : memref<64x32xf32, #tpu.memory_space<vmem>>, vector<64x32xf32>
    %cst_8 = arith.constant dense<0.000000e+00> : vector<16x32xf32>
    %9 = tpu.matmul %7, %8, %cst_8 {dimension_numbers = #tpu.dot_dimension_numbers<[1], [0], [0], [1], [0, 0, 1, 1], [], []>} : vector<16x64xf32>, vector<64x32xf32>, vector<16x32xf32> -> vector<16x32xf32>
    %c0_9 = arith.constant 0 : index
    %c0_10 = arith.constant 0 : index
    %10 = vector.load %arg5[%c0_9, %c0_10] : memref<1x32xf32, #tpu.memory_space<vmem>>, vector<1x32xf32>
    %11 = vector.broadcast %10 : vector<1x32xf32> to vector<16x32xf32>
    %12 = arith.addf %9, %11 : vector<16x32xf32>
    %c0_11 = arith.constant 0 : index
    %c0_12 = arith.constant 0 : index
    %13 = vector.load %arg6[%c0_11, %c0_12] : memref<16x32xf32, #tpu.memory_space<vmem>>, vector<16x32xf32>
    tpu.vector_store %arg6[%c0_11, %c0_12], %12 {strides = array<i32>} : memref<16x32xf32, #tpu.memory_space<vmem>>, vector<16x32xf32>,
    return
  }
  func.func @transform_0(%arg0: i32) -> (i32, i32) {
    %c0_i32 = arith.constant 0 : i32
    %c0_i32_0 = arith.constant 0 : i32
    return %arg0, %c0_i32 : i32, i32
  }
  func.func @transform_1(%arg0: i32) -> (i32, i32) {
    %c0_i32 = arith.constant 0 : i32
    %c0_i32_0 = arith.constant 0 : i32
    %c0_i32_1 = arith.constant 0 : i32
    return %c0_i32, %c0_i32_0 : i32, i32
  }
  func.func @transform_2(%arg0: i32) -> (i32, i32) {
    %c0_i32 = arith.constant 0 : i32
    %c0_i32_0 = arith.constant 0 : i32
    %c0_i32_1 = arith.constant 0 : i32
    return %c0_i32, %c0_i32_0 : i32, i32
  }
  func.func @transform_3(%arg0: i32) -> (i32, i32) {
    %c0_i32 = arith.constant 0 : i32
    %c0_i32_0 = arith.constant 0 : i32
    %c0_i32_1 = arith.constant 0 : i32
    return %c0_i32, %c0_i32_0 : i32, i32
  }
  func.func @transform_4(%arg0: i32) -> (i32, i32) {
    %c0_i32 = arith.constant 0 : i32
    %c0_i32_0 = arith.constant 0 : i32
    %c0_i32_1 = arith.constant 0 : i32
    return %c0_i32, %c0_i32_0 : i32, i32
  }
  func.func @transform_5(%arg0: i32) -> (i32, i32) {
    %c0_i32 = arith.constant 0 : i32
    %c0_i32_0 = arith.constant 0 : i32
    return %arg0, %c0_i32 : i32, i32
  }
}

</mosaic_0001>

<llo_original>
// kernel: tpu_custom_call.1
$region0: #{tpu_custom_call.1}
  #allocation0 [shape = 'u32[]', space=smem, size = 0x4, offset = 0x4, fixed_abs, tag = 'smem constant byte address 0x4 - core index']
  #allocation1 [shape = 'u32[144,128]{1,0:T(1,128)}', space=vmem, size = 0x12000, scoped, tag = 'internal scratch']
  %s0 = inlined_call_operand.vmem [shape: f32[16,32], index: 0, kind: input, shape index: {}]
  %s1 = inlined_call_operand.vmem [shape: f32[32,64], index: 1, kind: input, shape index: {}]
  %s2 = inlined_call_operand.vmem [shape: f32[1,64], index: 2, kind: input, shape index: {}]
  %s3 = inlined_call_operand.vmem [shape: f32[64,32], index: 3, kind: input, shape index: {}]
  %s4 = inlined_call_operand.vmem [shape: f32[1,32], index: 4, kind: input, shape index: {}]
  %s5 = inlined_call_operand.hbm [shape: f32[16,32], index: 5, kind: output, shape index: {}]
  %s6 = sld [smem:[#allocation0]]
  $region30: #{tpu_custom_call.1} parent=0
    _
  %s8 = ssub.s32 1, %s6
  %s9 = scalar_select 0, %s8, %s6
  $region1: #{tpu_custom_call.1} parent=0
    #allocation2 [shape = 'u8[8192]{0}', space=vmem, size = 0x2000, scoped, tag = 'output window, operand 0, single buffered']
    #allocation3 [shape = 's32[1]{0}', space=sflag, size = 0x4, scoped, tag = 'scoped memory for tpu_custom_call.1']
    %10 = vsyncpa [#allocation3], 0
    // Predicated region
    $region2: #{tpu_custom_call.1} parent=1 // pred_check
      _
    $region3: #{tpu_custom_call.1} parent=1 // pred_check_branch
      %12 = sbr.rel (0) target = $region5
    $region4: #{tpu_custom_call.1} parent=1 // pred_region
      _
    $region5: #{tpu_custom_call.1} parent=1 // pred_fallthru
      _
    // Predicated region
    $region6: #{tpu_custom_call.1} parent=1 // pred_check
      _
    $region7: #{tpu_custom_call.1} parent=1 // pred_check_branch
      %14 = sbr.rel (0) target = $region9
    $region8: #{tpu_custom_call.1} parent=1 // pred_region
      _
    $region9: #{tpu_custom_call.1} parent=1 // pred_fallthru
      _
    // Predicated region
    $region10: #{tpu_custom_call.1} parent=1 // pred_check
      _
    $region11: #{tpu_custom_call.1} parent=1 // pred_check_branch
      %16 = sbr.rel (0) target = $region13
    $region12: #{tpu_custom_call.1} parent=1 // pred_region
      _
    $region13: #{tpu_custom_call.1} parent=1 // pred_fallthru
      _
    // Predicated region
    $region14: #{tpu_custom_call.1} parent=1 // pred_check
      _
    $region15: #{tpu_custom_call.1} parent=1 // pred_check_branch
      %18 = sbr.rel (0) target = $region17
    $region16: #{tpu_custom_call.1} parent=1 // pred_region
      _
    $region17: #{tpu_custom_call.1} parent=1 // pred_fallthru
      _
    // Predicated region
    $region18: #{tpu_custom_call.1} parent=1 // pred_check
      _
    $region19: #{tpu_custom_call.1} parent=1 // pred_check_branch
      %20 = sbr.rel (0) target = $region21
    $region20: #{tpu_custom_call.1} parent=1 // pred_region
      _
    $region21: #{tpu_custom_call.1} parent=1 // pred_fallthru
      _
    %v21 = vld [vmem:[%s0] sm:$0xff]
    %v22 = vld [vmem:[%s0 + $0x8] sm:$0xff]
    %v23 = vld [vmem:[%s1] sm:$0xff]
    %v24 = vld [vmem:[%s1 + $0x8] sm:$0xff]
    %v25 = vld [vmem:[%s1 + $0x10] sm:$0xff]
    %v26 = vld [vmem:[%s1 + $0x18] sm:$0xff]
    %v27 = vld [vmem:[%s2] sm:$0x1]
    %v29 = vlaneseq
    %v30 = vshrl.u32 %v29, 7
    %v31 = vsub.s32 0, %v30
    %v32 = vrot.slane %v27, %v31
    %vm34 = vcmask 261120
    %v36 = vsel %vm34, %v21, 0
    %v39 = vsel %vm34, %v22, 0
    %41 = vmatprep.subr.mxu0 0.0
    %42 = vmatpush1.msra.mxu0 %v23
    %43 = vmatprep.subr.mxu0 0.0
    %44 = vmatpush1.msra.mxu0 %v24
    %45 = vmatprep.subr.mxu0 0.0
    %46 = vmatpush1.msra.mxu0 %v25
    %47 = vmatprep.subr.mxu0 0.0
    %48 = vmatpush1.msra.mxu0 %v26
    %49 = vmatprep.subr.mxu0 0.0
    %50 = vmatpush1.msra.mxu0 0.0
    %51 = vmatprep.subr.mxu0 0.0
    %52 = vmatpush1.msra.mxu0 0.0
    %53 = vmatprep.subr.mxu0 0.0
    %54 = vmatpush1.msra.mxu0 0.0
    %55 = vmatprep.subr.mxu0 0.0
    %56 = vmatpush1.msra.mxu0 0.0
    %57 = vmatprep.subr.mxu0 0.0
    %58 = vmatpush1.msra.mxu0 0.0
    %59 = vmatprep.subr.mxu0 0.0
    %60 = vmatpush1.msra.mxu0 0.0
    %61 = vmatprep.subr.mxu0 0.0
    %62 = vmatpush1.msra.mxu0 0.0
    %63 = vmatprep.subr.mxu0 0.0
    %64 = vmatpush1.msra.mxu0 0.0
    %65 = vmatprep.subr.mxu0 0.0
    %66 = vmatpush1.msra.mxu0 0.0
    %67 = vmatprep.subr.mxu0 0.0
    %68 = vmatpush1.msra.mxu0 0.0
    %69 = vmatprep.subr.mxu0 0.0
    %70 = vmatpush1.msra.mxu0 0.0
    %71 = vmatprep.subr.mxu0 0.0
    %72 = vmatpush1.msra.mxu0 0.0
    %73 = vmatprep.subr.mxu0 0.0
    %74 = vmatpush1.msra.mxu0 0.0
    %75 = vmatprep.subr.mxu0 0.0
    %76 = vmatpush1.msra.mxu0 0.0
    %77 = vmatprep.subr.mxu0 0.0
    %78 = vmatpush1.msra.mxu0 0.0
    %79 = vmatprep.subr.mxu0 0.0
    %80 = vmatpush1.msra.mxu0 0.0
    %81 = vmatprep.subr.mxu0 0.0
    %82 = vmatpush1.msra.mxu0 0.0
    %83 = vmatprep.subr.mxu0 0.0
    %84 = vmatpush1.msra.mxu0 0.0
    %85 = vmatprep.subr.mxu0 0.0
    %86 = vmatpush1.msra.mxu0 0.0
    %87 = vmatprep.subr.mxu0 0.0
    %88 = vmatpush1.msra.mxu0 0.0
    %89 = vmatprep.subr.mxu0 0.0
    %90 = vmatpush1.msra.mxu0 0.0
    %91 = vmatprep.subr.mxu0 0.0
    %92 = vmatpush1.msra.mxu0 0.0
    %93 = vmatprep.subr.mxu0 0.0
    %94 = vmatpush1.msra.mxu0 0.0
    %95 = vmatprep.subr.mxu0 0.0
    %96 = vmatpush1.msra.mxu0 0.0
    %97 = vmatprep.subr.mxu0 0.0
    %98 = vmatpush1.msra.mxu0 0.0
    %99 = vmatprep.subr.mxu0 0.0
    %100 = vmatpush1.msra.mxu0 0.0
    %101 = vmatprep.subr.mxu0 0.0
    %102 = vmatpush1.msra.mxu0 0.0
    %103 = vmatprep.subr.mxu0 0.0
    %104 = vmatpush1.msra.mxu0 0.0
    %105 = vmatprep.mubr.f32.mxu0 0.0
    %106 = vmatmul.mubr.f32.gmra.mrb[0].mxu0 %v36
    %v107 = vpop.f32.mrb[0].mxu0
    %v108 = vadd.f32 %v32, %v107
    %v109 = vpop.f32.mrb[0].mxu0
    %110 = vmatprep.mubr.f32.mxu0 0.0
    %111 = vmatmul.mubr.f32.gmra.mrb[0].mxu0 %v39
    %v112 = vpop.f32.mrb[0].mxu0
    %v113 = vadd.f32 %v32, %v112
    %v114 = vpop.f32.mrb[0].mxu0
    %115 = vdwg.mxu0
    %v116 = vmax.f32 %v108, 0.0
    %v117 = vmax.f32 %v113, 0.0
    %v118 = vld [vmem:[%s3] sm:$0xff]
    %v119 = vld [vmem:[%s3 + $0x8] sm:$0xff]
    %v120 = vld [vmem:[%s3 + $0x10] sm:$0xff]
    %v121 = vld [vmem:[%s3 + $0x18] sm:$0xff]
    %v122 = vld [vmem:[%s3 + $0x20] sm:$0xff]
    %v123 = vld [vmem:[%s3 + $0x28] sm:$0xff]
    %v124 = vld [vmem:[%s3 + $0x30] sm:$0xff]
    %v125 = vld [vmem:[%s3 + $0x38] sm:$0xff]
    %v126 = vld [vmem:[%s4] sm:$0x1]
    %v128 = vlaneseq
    %v129 = vshrl.u32 %v128, 7
    %v130 = vsub.s32 0, %v129
    %v131 = vrot.slane %v126, %v130
    %vm133 = vcmask 523264
    %v135 = vsel %vm133, %v116, 0
    %v138 = vsel %vm133, %v117, 0
    %140 = vmatprep.subr.mxu0 0.0
    %141 = vmatpush1.msra.mxu0 %v118
    %142 = vmatprep.subr.mxu0 0.0
    %143 = vmatpush1.msra.mxu0 %v119
    %144 = vmatprep.subr.mxu0 0.0
    %145 = vmatpush1.msra.mxu0 %v120
    %146 = vmatprep.subr.mxu0 0.0
    %147 = vmatpush1.msra.mxu0 %v121
    %148 = vmatprep.subr.mxu0 0.0
    %149 = vmatpush1.msra.mxu0 %v122
    %150 = vmatprep.subr.mxu0 0.0
    %151 = vmatpush1.msra.mxu0 %v123
    %152 = vmatprep.subr.mxu0 0.0
    %153 = vmatpush1.msra.mxu0 %v124
    %154 = vmatprep.subr.mxu0 0.0
    %155 = vmatpush1.msra.mxu0 %v125
    %156 = vmatprep.subr.mxu0 0.0
    %157 = vmatpush1.msra.mxu0 0.0
    %158 = vmatprep.subr.mxu0 0.0
    %159 = vmatpush1.msra.mxu0 0.0
    %160 = vmatprep.subr.mxu0 0.0
    %161 = vmatpush1.msra.mxu0 0.0
    %162 = vmatprep.subr.mxu0 0.0
    %163 = vmatpush1.msra.mxu0 0.0
    %164 = vmatprep.subr.mxu0 0.0
    %165 = vmatpush1.msra.mxu0 0.0
    %166 = vmatprep.subr.mxu0 0.0
    %167 = vmatpush1.msra.mxu0 0.0
    %168 = vmatprep.subr.mxu0 0.0
    %169 = vmatpush1.msra.mxu0 0.0
    %170 = vmatprep.subr.mxu0 0.0
    %171 = vmatpush1.msra.mxu0 0.0
    %172 = vmatprep.subr.mxu0 0.0
    %173 = vmatpush1.msra.mxu0 0.0
    %174 = vmatprep.subr.mxu0 0.0
    %175 = vmatpush1.msra.mxu0 0.0
    %176 = vmatprep.subr.mxu0 0.0
    %177 = vmatpush1.msra.mxu0 0.0
    %178 = vmatprep.subr.mxu0 0.0
    %179 = vmatpush1.msra.mxu0 0.0
    %180 = vmatprep.subr.mxu0 0.0
    %181 = vmatpush1.msra.mxu0 0.0
    %182 = vmatprep.subr.mxu0 0.0
    %183 = vmatpush1.msra.mxu0 0.0
    %184 = vmatprep.subr.mxu0 0.0
    %185 = vmatpush1.msra.mxu0 0.0
    %186 = vmatprep.subr.mxu0 0.0
    %187 = vmatpush1.msra.mxu0 0.0
    %188 = vmatprep.subr.mxu0 0.0
    %189 = vmatpush1.msra.mxu0 0.0
    %190 = vmatprep.subr.mxu0 0.0
    %191 = vmatpush1.msra.mxu0 0.0
    %192 = vmatprep.subr.mxu0 0.0
    %193 = vmatpush1.msra.mxu0 0.0
    %194 = vmatprep.subr.mxu0 0.0
    %195 = vmatpush1.msra.mxu0 0.0
    %196 = vmatprep.subr.mxu0 0.0
    %197 = vmatpush1.msra.mxu0 0.0
    %198 = vmatprep.subr.mxu0 0.0
    %199 = vmatpush1.msra.mxu0 0.0
    %200 = vmatprep.subr.mxu0 0.0
    %201 = vmatpush1.msra.mxu0 0.0
    %202 = vmatprep.subr.mxu0 0.0
    %203 = vmatpush1.msra.mxu0 0.0
    %204 = vmatprep.mubr.f32.mxu0 0.0
    %205 = vmatmul.mubr.f32.gmra.mrb[0].mxu0 %v135
    %v206 = vpop.f32.mrb[0].mxu0
    %v207 = vadd.f32 %v131, %v206
    %v208 = vpop.f32.mrb[0].mxu0
    %209 = vmatprep.mubr.f32.mxu0 0.0
    %210 = vmatmul.mubr.f32.gmra.mrb[0].mxu0 %v138
    %v211 = vpop.f32.mrb[0].mxu0
    %v212 = vadd.f32 %v131, %v211
    %v213 = vpop.f32.mrb[0].mxu0
    %214 = vdwg.mxu0
    %215 = vst.msk [vmem:[#allocation2] sm:$0xff] %vm34, %v207
    %216 = vst.msk [vmem:[#allocation2 + $0x8] sm:$0xff] %vm34, %v212
    // Predicated region
    $region22: #{tpu_custom_call.1} parent=1 // pred_check
      _
    $region23: #{tpu_custom_call.1} parent=1 // pred_check_branch
      %218 = sbr.rel (0) target = $region25
    $region24: #{tpu_custom_call.1} parent=1 // pred_region
      %s220 = ssub.s32 256, 256
      %221 = vsyncadd [#allocation3], %s220
      %s222 = sshll.u32 [#allocation2], 4
      %s223 = int_to_ptr.vmem [resolvable:$true] %s222
      %228 = dma.vmem_to_hbm [thread:$0]  %s223, 256, %s5, [#allocation3], 128, 128, 8
    $region25: #{tpu_custom_call.1} parent=1 // pred_fallthru
      _
    // Predicated region
    $region26: #{tpu_custom_call.1} parent=1 // pred_check
      _
    $region27: #{tpu_custom_call.1} parent=1 // pred_check_branch
      %230 = sbr.rel (0) target = $region29
    $region28: #{tpu_custom_call.1} parent=1 // pred_region
      %231 = dma.done [#allocation3], 256
    $region29: #{tpu_custom_call.1} parent=1 // pred_fallthru
      _
    %232 = vsyncpa [#allocation3], 1

</llo_original>
